<compile_context>
chip_gen: v6e
topology: v6e:2x2x1
jax: 0.10.0
libtpu: 0.0.40
codegen_flags: <defaults>
</compile_context>

<pallas_src>
import functools

import jax
import jax.numpy as jnp
from jax import lax
from jax.experimental import pallas as pl
from jax.experimental.pallas import tpu as pltpu

_CHUNK_ROWS = 32  # sublane rows per in-kernel compute chunk (4 vregs / slab)


def _mwce_kernel(logits_ref, target_ref, mask_ref, out_ref, *,
                 num_classes, chunk, n_chunks, rows_per_tile,
                 inmask_weight, outmask_weight,
                 needs_tail_mask, valid_last_tile):
    """One grid step: weighted-CE partial sums over a (C, S_tile, 128) block."""
    inw = jnp.float32(inmask_weight)
    outw = jnp.float32(outmask_weight)

    if needs_tail_mask:
        # Only the last spatial tile is ragged; use a scalar valid-pixel count
        # so non-last tiles pay only one compare per chunk.
        is_last = pl.program_id(1) == pl.num_programs(1) - 1
        limit = jnp.where(is_last, jnp.int32(valid_last_tile),
                          jnp.int32(rows_per_tile * 128))

    def chunk_body(i, acc):
        r0 = i * chunk
        if not isinstance(r0, int):
            r0 = pl.multiple_of(r0, chunk)
        rows = pl.ds(r0, chunk)

        tgt = target_ref[rows, :]                               # (chunk,128) int

        # Pass 1: per-pixel max over classes (elementwise VPU max of C slabs).
        m = logits_ref[0, rows, :].astype(jnp.float32)
        for k in range(1, num_classes):
            m = jnp.maximum(m, logits_ref[k, rows, :].astype(jnp.float32))

        # Pass 2: sum-exp + target-class shifted logit via per-class selects
        # (no (C, T) iota/one-hot, no cross-sublane reduce).
        sumexp = jnp.zeros_like(m)
        picked = jnp.zeros_like(m)
        for k in range(num_classes):
            z = logits_ref[k, rows, :].astype(jnp.float32) - m
            sumexp = sumexp + jnp.exp(z)
            picked = jnp.where(tgt == k, z, picked)
        ce = jnp.log(sumexp) - picked                           # (chunk,128)

        maskv = mask_ref[rows, :]
        inmask = maskv if jnp.issubdtype(maskv.dtype, jnp.bool_) else maskv > 0
        wce = jnp.where(inmask, inw, outw) * ce

        if needs_tail_mask:
            flat = (r0 * 128
                    + lax.broadcasted_iota(jnp.int32, (chunk, 128), 0) * 128
                    + lax.broadcasted_iota(jnp.int32, (chunk, 128), 1))
            # Must be a select, NOT a multiply: boundary-block / padded pixels
            # can hold garbage that yields NaN/Inf CE and x*0 would keep NaN.
            wce = jnp.where(flat < limit, wce, jnp.float32(0.0))
        return acc + wce

    acc0 = jnp.zeros((chunk, 128), jnp.float32)
    if n_chunks == 1:
        acc = chunk_body(0, acc0)
    else:
        acc = lax.fori_loop(0, n_chunks, chunk_body, acc0)

    # One compact sublane reduce -> lane-dense (1, 128) partial output.
    out_ref[...] = jnp.sum(acc, axis=0, keepdims=True)


def _choose_rows_per_tile(n, c, s_total, itemsize, *,
                          target_bytes=2 << 20, min_steps=8):
    """Rows (of 128 px) per grid step: ~target_bytes of logits per step,
    multiple of _CHUNK_ROWS, shrunk so the pipeline has at least a few steps.
    2 MiB/step keeps the double-buffered footprint well under the smallest
    scoped-VMEM default (v5e 16 MiB, v7x 32 MiB per TC)."""
    if s_total <= _CHUNK_ROWS:
        return s_total
    bytes_per_row = 128 * c * itemsize
    rows = (target_bytes // bytes_per_row) // _CHUNK_ROWS * _CHUNK_ROWS
    rows = int(max(_CHUNK_ROWS,
                   min(rows, (s_total // _CHUNK_ROWS) * _CHUNK_ROWS)))
    # Degenerate-grid guard: BlockSpec pipelining needs several steps.
    while rows > _CHUNK_ROWS and n * pl.cdiv(s_total, rows) < min_steps:
        rows -= _CHUNK_ROWS
    return rows


def mask_weighted_cross_entropy_loss(predict, target, mask,
                                     inmask_weight=5, outmask_weight=1,
                                     rows_per_tile=None):
    """predict: (N, C, H, W) float; target: (N, H, W) int; mask: (N, H, W)."""
    n, c, h, w = predict.shape
    hw = h * w
    s_total = pl.cdiv(hw, 128)
    hw_pad = s_total * 128

    logits = predict.reshape(n, c, hw)
    tgt = target.reshape(n, hw)
    msk = mask.reshape(n, hw)
    if hw_pad != hw:
        # TODO(synk): pads the dominant logits stream (one extra HBM copy);
        # only hit when H*W is not a multiple of 128. Padded pixels are
        # excluded in-kernel via the tail mask.
        pad = hw_pad - hw
        logits = jnp.pad(logits, ((0, 0), (0, 0), (0, pad)))
        tgt = jnp.pad(tgt, ((0, 0), (0, pad)))
        msk = jnp.pad(msk, ((0, 0), (0, pad)))

    # Free reshapes to the dense (sublane, lane) spatial layout; target/mask
    # keep their producer dtypes (no wrapper casts -> no extra HBM passes).
    logits = logits.reshape(n, c, s_total, 128)
    tgt = tgt.reshape(n, s_total, 128)
    msk = msk.reshape(n, s_total, 128)

    if rows_per_tile is None:
        rows_per_tile = _choose_rows_per_tile(n, c, s_total,
                                              logits.dtype.itemsize)
    num_t = pl.cdiv(s_total, rows_per_tile)
    chunk = min(_CHUNK_ROWS, rows_per_tile)
    n_chunks = rows_per_tile // chunk            # rows_per_tile % chunk == 0
    valid_last_tile = hw - (num_t - 1) * rows_per_tile * 128
    needs_tail_mask = valid_last_tile < rows_per_tile * 128

    kernel = functools.partial(
        _mwce_kernel,
        num_classes=c, chunk=chunk, n_chunks=n_chunks,
        rows_per_tile=rows_per_tile,
        inmask_weight=float(inmask_weight),
        outmask_weight=float(outmask_weight),
        needs_tail_mask=needs_tail_mask,
        valid_last_tile=int(valid_last_tile))

    bytes_accessed = (logits.size * logits.dtype.itemsize
                      + tgt.size * tgt.dtype.itemsize
                      + msk.size * msk.dtype.itemsize
                      + n * num_t * 128 * 4)
    cost = pl.CostEstimate(
        flops=(4 * c + 6) * n * hw,
        transcendentals=n * hw * (c + 1),
        bytes_accessed=int(bytes_accessed))

    partials = pl.pallas_call(
        kernel,
        out_shape=jax.ShapeDtypeStruct((n, 1, num_t * 128), jnp.float32),
        grid_spec=pltpu.PrefetchScalarGridSpec(
            num_scalar_prefetch=0,
            grid=(n, num_t),
            in_specs=[
                pl.BlockSpec((None, c, rows_per_tile, 128),
                             lambda b, t: (b, 0, t, 0)),
                pl.BlockSpec((None, rows_per_tile, 128),
                             lambda b, t: (b, t, 0)),
                pl.BlockSpec((None, rows_per_tile, 128),
                             lambda b, t: (b, t, 0)),
            ],
            out_specs=pl.BlockSpec((None, 1, 128), lambda b, t: (b, 0, t)),
        ),
        compiler_params=pltpu.CompilerParams(
            dimension_semantics=("parallel", "parallel"),
            vmem_limit_bytes=32 * 1024 * 1024),
        cost_estimate=cost,
    )(logits, tgt, msk)

    return jnp.sum(partials) / jnp.float32(n * hw)


def _reference(predict, target, mask, inmask_weight=5, outmask_weight=1):
    """Pure-JAX reference mirroring the PyTorch module."""
    n, c, h, w = predict.shape
    logits = jnp.transpose(predict, (0, 2, 3, 1)).reshape(-1, c)
    tgt = target.reshape(-1)
    m = mask.reshape(-1) > 0
    lse = jax.nn.logsumexp(logits, axis=-1)
    picked = jnp.take_along_axis(logits, tgt[:, None], axis=-1)[:, 0]
    ce = lse - picked
    weight = jnp.where(m, float(inmask_weight), float(outmask_weight))
    return jnp.sum(weight * ce) / (n * h * w)


if __name__ == "__main__":
    key = jax.random.PRNGKey(0)
    k1, k2, k3 = jax.random.split(key, 3)

    N, C, H, W = 2, 4, 16, 16
    predict = jax.random.normal(k1, (N, C, H, W), dtype=jnp.float32)
    target = jax.random.randint(k2, (N, H, W), 0, C, dtype=jnp.int32)
    # mask: roughly half the pixels inside the mask
    mask = (jax.random.uniform(k3, (N, H, W)) > 0.5).astype(jnp.float32)

    loss = mask_weighted_cross_entropy_loss(predict, target, mask,
                                            inmask_weight=5, outmask_weight=1)
    loss = jax.block_until_ready(loss)

    ref = _reference(predict, target, mask, 5, 1)
    assert jnp.allclose(loss, ref, rtol=1e-5, atol=1e-5), (loss, ref)

    print("KERNEL_OK")
</pallas_src>

<mosaic_0001>
module attributes {stable_mosaic.version = 11 : i64} {
  func.func @_mwce_kernel(%arg0: i32, %arg1: i32, %arg2: memref<1x4x2x128xf32, #tpu.memory_space<vmem>>, %arg3: memref<1x2x128xi32, #tpu.memory_space<vmem>>, %arg4: memref<1x2x128xf32, #tpu.memory_space<vmem>>, %arg5: memref<1x1x128xf32, #tpu.memory_space<vmem>>) attributes {dimension_semantics = [#tpu.dimension_semantics<parallel>, #tpu.dimension_semantics<parallel>], iteration_bounds = array<i64: 2, 1>, scalar_prefetch = 0 : i64, scratch_operands = 0 : i64, tpu.core_type = #tpu.core_type<tc>, window_params = [{transform_indices = @transform_0, window_bounds = array<i64: 1, 4, 2, 128>}, {transform_indices = @transform_1, window_bounds = array<i64: 1, 2, 128>}, {transform_indices = @transform_2, window_bounds = array<i64: 1, 2, 128>}, {transform_indices = @transform_3, window_bounds = array<i64: 1, 1, 128>}]} {
    %cst = arith.constant 0.000000e+00 : f32
    %0 = vector.broadcast %cst : f32 to vector<2x128xf32>
    %c0 = arith.constant 0 : index
    %c0_0 = arith.constant 0 : index
    %c0_1 = arith.constant 0 : index
    %1 = vector.load %arg3[%c0, %c0_0, %c0_1] : memref<1x2x128xi32, #tpu.memory_space<vmem>>, vector<1x2x128xi32>
    %2 = vector.shape_cast %1 : vector<1x2x128xi32> to vector<2x128xi32>
    %c0_2 = arith.constant 0 : index
    %c0_3 = arith.constant 0 : index
    %c0_4 = arith.constant 0 : index
    %c0_5 = arith.constant 0 : index
    %3 = vector.load %arg2[%c0_2, %c0_3, %c0_4, %c0_5] : memref<1x4x2x128xf32, #tpu.memory_space<vmem>>, vector<1x1x2x128xf32>
    %4 = vector.shape_cast %3 : vector<1x1x2x128xf32> to vector<2x128xf32>
    %c0_6 = arith.constant 0 : index
    %c1 = arith.constant 1 : index
    %c0_7 = arith.constant 0 : index
    %c0_8 = arith.constant 0 : index
    %5 = vector.load %arg2[%c0_6, %c1, %c0_7, %c0_8] : memref<1x4x2x128xf32, #tpu.memory_space<vmem>>, vector<1x1x2x128xf32>
    %6 = vector.shape_cast %5 : vector<1x1x2x128xf32> to vector<2x128xf32>
    %7 = arith.maximumf %4, %6 : vector<2x128xf32>
    %c0_9 = arith.constant 0 : index
    %c2 = arith.constant 2 : index
    %c0_10 = arith.constant 0 : index
    %c0_11 = arith.constant 0 : index
    %8 = vector.load %arg2[%c0_9, %c2, %c0_10, %c0_11] : memref<1x4x2x128xf32, #tpu.memory_space<vmem>>, vector<1x1x2x128xf32>
    %9 = vector.shape_cast %8 : vector<1x1x2x128xf32> to vector<2x128xf32>
    %10 = arith.maximumf %7, %9 : vector<2x128xf32>
    %c0_12 = arith.constant 0 : index
    %c3 = arith.constant 3 : index
    %c0_13 = arith.constant 0 : index
    %c0_14 = arith.constant 0 : index
    %11 = vector.load %arg2[%c0_12, %c3, %c0_13, %c0_14] : memref<1x4x2x128xf32, #tpu.memory_space<vmem>>, vector<1x1x2x128xf32>
    %12 = vector.shape_cast %11 : vector<1x1x2x128xf32> to vector<2x128xf32>
    %13 = arith.maximumf %10, %12 : vector<2x128xf32>
    %cst_15 = arith.constant 0.000000e+00 : f32
    %14 = vector.broadcast %cst_15 : f32 to vector<2x128xf32>
    %cst_16 = arith.constant 0.000000e+00 : f32
    %15 = vector.broadcast %cst_16 : f32 to vector<2x128xf32>
    %c0_17 = arith.constant 0 : index
    %c0_18 = arith.constant 0 : index
    %c0_19 = arith.constant 0 : index
    %c0_20 = arith.constant 0 : index
    %16 = vector.load %arg2[%c0_17, %c0_18, %c0_19, %c0_20] : memref<1x4x2x128xf32, #tpu.memory_space<vmem>>, vector<1x1x2x128xf32>
    %17 = vector.shape_cast %16 : vector<1x1x2x128xf32> to vector<2x128xf32>
    %18 = arith.subf %17, %13 : vector<2x128xf32>
    %19 = math.exp %18 : vector<2x128xf32>
    %20 = arith.addf %14, %19 : vector<2x128xf32>
    %c0_i32 = arith.constant 0 : i32
    %21 = vector.broadcast %c0_i32 : i32 to vector<2x128xi32>
    %22 = arith.cmpi eq, %2, %21 : vector<2x128xi32>
    %23 = arith.select %22, %18, %15 : vector<2x128xi1>, vector<2x128xf32>
    %c0_21 = arith.constant 0 : index
    %c1_22 = arith.constant 1 : index
    %c0_23 = arith.constant 0 : index
    %c0_24 = arith.constant 0 : index
    %24 = vector.load %arg2[%c0_21, %c1_22, %c0_23, %c0_24] : memref<1x4x2x128xf32, #tpu.memory_space<vmem>>, vector<1x1x2x128xf32>
    %25 = vector.shape_cast %24 : vector<1x1x2x128xf32> to vector<2x128xf32>
    %26 = arith.subf %25, %13 : vector<2x128xf32>
    %27 = math.exp %26 : vector<2x128xf32>
    %28 = arith.addf %20, %27 : vector<2x128xf32>
    %c1_i32 = arith.constant 1 : i32
    %29 = vector.broadcast %c1_i32 : i32 to vector<2x128xi32>
    %30 = arith.cmpi eq, %2, %29 : vector<2x128xi32>
    %31 = arith.select %30, %26, %23 : vector<2x128xi1>, vector<2x128xf32>
    %c0_25 = arith.constant 0 : index
    %c2_26 = arith.constant 2 : index
    %c0_27 = arith.constant 0 : index
    %c0_28 = arith.constant 0 : index
    %32 = vector.load %arg2[%c0_25, %c2_26, %c0_27, %c0_28] : memref<1x4x2x128xf32, #tpu.memory_space<vmem>>, vector<1x1x2x128xf32>
    %33 = vector.shape_cast %32 : vector<1x1x2x128xf32> to vector<2x128xf32>
    %34 = arith.subf %33, %13 : vector<2x128xf32>
    %35 = math.exp %34 : vector<2x128xf32>
    %36 = arith.addf %28, %35 : vector<2x128xf32>
    %c2_i32 = arith.constant 2 : i32
    %37 = vector.broadcast %c2_i32 : i32 to vector<2x128xi32>
    %38 = arith.cmpi eq, %2, %37 : vector<2x128xi32>
    %39 = arith.select %38, %34, %31 : vector<2x128xi1>, vector<2x128xf32>
    %c0_29 = arith.constant 0 : index
    %c3_30 = arith.constant 3 : index
    %c0_31 = arith.constant 0 : index
    %c0_32 = arith.constant 0 : index
    %40 = vector.load %arg2[%c0_29, %c3_30, %c0_31, %c0_32] : memref<1x4x2x128xf32, #tpu.memory_space<vmem>>, vector<1x1x2x128xf32>
    %41 = vector.shape_cast %40 : vector<1x1x2x128xf32> to vector<2x128xf32>
    %42 = arith.subf %41, %13 : vector<2x128xf32>
    %43 = math.exp %42 : vector<2x128xf32>
    %44 = arith.addf %36, %43 : vector<2x128xf32>
    %c3_i32 = arith.constant 3 : i32
    %45 = vector.broadcast %c3_i32 : i32 to vector<2x128xi32>
    %46 = arith.cmpi eq, %2, %45 : vector<2x128xi32>
    %47 = arith.select %46, %42, %39 : vector<2x128xi1>, vector<2x128xf32>
    %48 = math.log %44 : vector<2x128xf32>
    %49 = arith.subf %48, %47 : vector<2x128xf32>
    %c0_33 = arith.constant 0 : index
    %c0_34 = arith.constant 0 : index
    %c0_35 = arith.constant 0 : index
    %50 = vector.load %arg4[%c0_33, %c0_34, %c0_35] : memref<1x2x128xf32, #tpu.memory_space<vmem>>, vector<1x2x128xf32>
    %51 = vector.shape_cast %50 : vector<1x2x128xf32> to vector<2x128xf32>
    %cst_36 = arith.constant 0.000000e+00 : f32
    %52 = vector.broadcast %cst_36 : f32 to vector<2x128xf32>
    %53 = arith.cmpf ogt, %51, %52 : vector<2x128xf32>
    %cst_37 = arith.constant 5.000000e+00 : f32
    %cst_38 = arith.constant 1.000000e+00 : f32
    %54 = vector.broadcast %cst_37 : f32 to vector<2x128xf32>
    %55 = vector.broadcast %cst_38 : f32 to vector<2x128xf32>
    %56 = arith.select %53, %54, %55 : vector<2x128xi1>, vector<2x128xf32>
    %57 = arith.mulf %56, %49 : vector<2x128xf32>
    %58 = arith.addf %0, %57 : vector<2x128xf32>
    %cst_39 = arith.constant dense<0.000000e+00> : vector<128xf32>
    %59 = vector.multi_reduction <add>, %58, %cst_39 [0] : vector<2x128xf32> to vector<128xf32>
    %60 = vector.shape_cast %59 : vector<128xf32> to vector<1x128xf32>
    %c0_40 = arith.constant 0 : index
    %c0_41 = arith.constant 0 : index
    %c0_42 = arith.constant 0 : index
    %61 = vector.load %arg5[%c0_40, %c0_41, %c0_42] : memref<1x1x128xf32, #tpu.memory_space<vmem>>, vector<1x1x128xf32>
    %62 = vector.shape_cast %61 : vector<1x1x128xf32> to vector<1x128xf32>
    %63 = vector.shape_cast %60 : vector<1x128xf32> to vector<1x1x128xf32>
    tpu.vector_store %arg5[%c0_40, %c0_41, %c0_42], %63 {strides = array<i32>} : memref<1x1x128xf32, #tpu.memory_space<vmem>>, vector<1x1x128xf32>,
    return
  }
  func.func @transform_0(%arg0: i32, %arg1: i32) -> (i32, i32, i32, i32) {
    %c0_i32 = arith.constant 0 : i32
    %c0_i32_0 = arith.constant 0 : i32
    %c0_i32_1 = arith.constant 0 : i32
    return %arg0, %c0_i32, %arg1, %c0_i32_0 : i32, i32, i32, i32
  }
  func.func @transform_1(%arg0: i32, %arg1: i32) -> (i32, i32, i32) {
    %c0_i32 = arith.constant 0 : i32
    %c0_i32_0 = arith.constant 0 : i32
    return %arg0, %arg1, %c0_i32 : i32, i32, i32
  }
  func.func @transform_2(%arg0: i32, %arg1: i32) -> (i32, i32, i32) {
    %c0_i32 = arith.constant 0 : i32
    %c0_i32_0 = arith.constant 0 : i32
    return %arg0, %arg1, %c0_i32 : i32, i32, i32
  }
  func.func @transform_3(%arg0: i32, %arg1: i32) -> (i32, i32, i32) {
    %c0_i32 = arith.constant 0 : i32
    %c0_i32_0 = arith.constant 0 : i32
    return %arg0, %c0_i32, %arg1 : i32, i32, i32
  }
}

</mosaic_0001>

<llo_original>
// kernel: tpu_custom_call.1
$region0: #{tpu_custom_call.1}
  #allocation0 [shape = 'u32[]', space=smem, size = 0x4, offset = 0x4, fixed_abs, tag = 'smem constant byte address 0x4 - core index']
  #allocation1 [shape = 'u32[144,128]{1,0:T(1,128)}', space=vmem, size = 0x12000, scoped, tag = 'internal scratch']
  %s0 = inlined_call_operand.hbm [shape: f32[2,4,2,128], index: 0, kind: input, shape index: {}]
  %s1 = inlined_call_operand.hbm [shape: s32[2,2,128], index: 1, kind: input, shape index: {}]
  %s2 = inlined_call_operand.hbm [shape: f32[2,2,128], index: 2, kind: input, shape index: {}]
  %s3 = inlined_call_operand.hbm [shape: f32[2,1,128], index: 3, kind: output, shape index: {}]
  %s4 = sld [smem:[#allocation0]]
  $region57: #{tpu_custom_call.1} parent=0
    _
  %s6 = ssub.s32 1, %s4
  %s7 = scalar_select 0, %s6, %s4
  $region1: #{tpu_custom_call.1} parent=0
    #allocation2 [shape = 'u8[8192]{0}', space=vmem, size = 0x2000, scoped, tag = 'input window, operand 0']
    #allocation3 [shape = 's32[2]{0}', space=sflag, size = 0x8, scoped, tag = 'scoped memory for tpu_custom_call.1']
    #allocation4 [shape = 's32[2]{0}', space=sflag, size = 0x8, scoped, tag = 'scoped memory for tpu_custom_call.1']
    #allocation5 [shape = 'u8[2048]{0}', space=vmem, size = 0x800, scoped, tag = 'input window, operand 1']
    #allocation6 [shape = 's32[2]{0}', space=sflag, size = 0x8, scoped, tag = 'scoped memory for tpu_custom_call.1']
    #allocation7 [shape = 'u8[2048]{0}', space=vmem, size = 0x800, scoped, tag = 'input window, operand 2']
    #allocation8 [shape = 'u8[1024]{0}', space=vmem, size = 0x400, scoped, tag = 'output window, operand 0']
    %8 = vsyncpa [#allocation3], 0
    %s9 = scalar_lea.sflag [#allocation3], 1
    %10 = vsyncpa %s9, 0
    %11 = vsyncpa [#allocation6], 0
    %s12 = scalar_lea.sflag [#allocation6], 1
    %13 = vsyncpa %s12, 0
    %14 = vsyncpa [#allocation4], 0
    %s15 = scalar_lea.sflag [#allocation4], 1
    %16 = vsyncpa %s15, 0
    loop: start=0, step=1, limit=4
    $region2: #{tpu_custom_call.1} parent=1 // loop_pre_header
      _
    $region3: #{tpu_custom_call.1} parent=1 // loop_header
      %s18 = sphi 0, %s22
      %p19 = scmp.ge.s32.totalorder %s18, 4
      %s25 = sphi 0, %s37
      %s26 = sphi 0, %s33
      %s27 = sphi 0, %s25
      %s28 = sphi 0, %s26
      %s29 = sphi 0, %s27
      %s30 = sphi 0, %s28
      %s42 = sphi 0, %s44
      %s45 = sphi 0, %s42
      %s46 = sphi 0, %s45
      %s62 = sphi 0, %s46
      %s70 = sphi 0, %s72
      %s73 = sphi 0, %s70
      %s74 = sphi 0, %s73
      %s90 = sphi 0, %s74
      %s98 = sphi 0, %s100
      %s101 = sphi 0, %s98
      %s102 = sphi 0, %s101
      %s118 = sphi 0, %s102
      %s126 = sphi 0, %s128
      %s129 = sphi 0, %s126
      %s130 = sphi 0, %s129
      %s146 = sphi 0, %s130
    $region4: #{tpu_custom_call.1} parent=1 // loop_header_branch
      %21 = sbr.rel (%p19) target = $region8
    $region5: #{tpu_custom_call.1} parent=1 // loop_body
      %s23 = ssub.s32 %s18, 1
      %s24 = ssub.s32 %s18, 2
      %s31 = sadd.s32 1, %s26
      %p32 = scmp.ge.s32.totalorder %s31, 1
      %s33 = scalar_select %p32, 0, %s31
      %s34 = sadd.s32 1, %s25
      %s35 = scalar_select %p32, %s34, %s25
      %p36 = scmp.ge.s32.totalorder %s35, 2
      %s37 = scalar_select %p36, 0, %s35
      %s38 = ssub.s32 %s25, %s37
      %s39 = ssub.s32 %s26, %s33
      %s40 = sor.u32 %s38, %s39
      %p41 = scmp.eq.s32.totalorder %s40, 0
      %s43 = sadd.s32 %s42, 1
      %s44 = scalar_select %p41, %s42, %s43
      %p47 = pneg %p41
      %p48 = scmp.eq.s32.totalorder %s18, 1
      %p49 = por %p47, %p48
      %p50 = scmp.ne.s32.totalorder %s42, %s45
      %p51 = scmp.eq.s32.totalorder %s18, 0
      %p52 = por %p50, %p51
      %p53 = scmp.ne.s32.totalorder %s42, %s45
      %p54 = scmp.eq.s32.totalorder %s23, 1
      %p55 = por %p53, %p54
      %p56 = scmp.ne.s32.totalorder %s45, %s46
      %p57 = scmp.eq.s32.totalorder %s23, 0
      %p58 = por %p56, %p57
      %p59 = scmp.ne.s32.totalorder %s45, %s46
      %p60 = scmp.eq.s32.totalorder %s24, 1
      %p61 = por %p59, %p60
      %p63 = scmp.ne.s32.totalorder %s46, %s62
      %p64 = scmp.eq.s32.totalorder %s24, 0
      %p65 = por %p63, %p64
      %s66 = ssub.s32 %s25, %s37
      %s67 = ssub.s32 %s26, %s33
      %s68 = sor.u32 %s66, %s67
      %p69 = scmp.eq.s32.totalorder %s68, 0
      %s71 = sadd.s32 %s70, 1
      %s72 = scalar_select %p69, %s70, %s71
      %p75 = pneg %p69
      %p76 = scmp.eq.s32.totalorder %s18, 1
      %p77 = por %p75, %p76
      %p78 = scmp.ne.s32.totalorder %s70, %s73
      %p79 = scmp.eq.s32.totalorder %s18, 0
      %p80 = por %p78, %p79
      %p81 = scmp.ne.s32.totalorder %s70, %s73
      %p82 = scmp.eq.s32.totalorder %s23, 1
      %p83 = por %p81, %p82
      %p84 = scmp.ne.s32.totalorder %s73, %s74
      %p85 = scmp.eq.s32.totalorder %s23, 0
      %p86 = por %p84, %p85
      %p87 = scmp.ne.s32.totalorder %s73, %s74
      %p88 = scmp.eq.s32.totalorder %s24, 1
      %p89 = por %p87, %p88
      %p91 = scmp.ne.s32.totalorder %s74, %s90
      %p92 = scmp.eq.s32.totalorder %s24, 0
      %p93 = por %p91, %p92
      %s94 = ssub.s32 %s25, %s37
      %s95 = ssub.s32 %s26, %s33
      %s96 = sor.u32 %s94, %s95
      %p97 = scmp.eq.s32.totalorder %s96, 0
      %s99 = sadd.s32 %s98, 1
      %s100 = scalar_select %p97, %s98, %s99
      %p103 = pneg %p97
      %p104 = scmp.eq.s32.totalorder %s18, 1
      %p105 = por %p103, %p104
      %p106 = scmp.ne.s32.totalorder %s98, %s101
      %p107 = scmp.eq.s32.totalorder %s18, 0
      %p108 = por %p106, %p107
      %p109 = scmp.ne.s32.totalorder %s98, %s101
      %p110 = scmp.eq.s32.totalorder %s23, 1
      %p111 = por %p109, %p110
      %p112 = scmp.ne.s32.totalorder %s101, %s102
      %p113 = scmp.eq.s32.totalorder %s23, 0
      %p114 = por %p112, %p113
      %p115 = scmp.ne.s32.totalorder %s101, %s102
      %p116 = scmp.eq.s32.totalorder %s24, 1
      %p117 = por %p115, %p116
      %p119 = scmp.ne.s32.totalorder %s102, %s118
      %p120 = scmp.eq.s32.totalorder %s24, 0
      %p121 = por %p119, %p120
      %s122 = ssub.s32 %s25, %s37
      %s123 = ssub.s32 %s26, %s33
      %s124 = sor.u32 %s122, %s123
      %p125 = scmp.eq.s32.totalorder %s124, 0
      %s127 = sadd.s32 %s126, 1
      %s128 = scalar_select %p125, %s126, %s127
      %p131 = pneg %p125
      %p132 = scmp.eq.s32.totalorder %s18, 1
      %p133 = por %p131, %p132
      %p134 = scmp.ne.s32.totalorder %s126, %s129
      %p135 = scmp.eq.s32.totalorder %s18, 0
      %p136 = por %p134, %p135
      %p137 = scmp.ne.s32.totalorder %s126, %s129
      %p138 = scmp.eq.s32.totalorder %s23, 1
      %p139 = por %p137, %p138
      %p140 = scmp.ne.s32.totalorder %s129, %s130
      %p141 = scmp.eq.s32.totalorder %s23, 0
      %p142 = por %p140, %p141
      %p143 = scmp.ne.s32.totalorder %s129, %s130
      %p144 = scmp.eq.s32.totalorder %s24, 1
      %p145 = por %p143, %p144
      %p147 = scmp.ne.s32.totalorder %s130, %s146
      %p148 = scmp.eq.s32.totalorder %s24, 0
      %p149 = por %p147, %p148
      %p150 = scmp.le.s32.totalorder 1, %s18
      %p151 = scmp.lt.s32.totalorder %s18, 3
      %p152 = pnand %p150, %p151
      %p153 = pneg %p152
      // Predicated region
      $region9: #{tpu_custom_call.1} parent=5 // pred_check
        _
      $region10: #{tpu_custom_call.1} parent=5 // pred_check_branch
        %155 = sbr.rel (%p152) target = $region12
      $region11: #{tpu_custom_call.1} parent=5 // pred_region
        %s156 = ssub.s32 %s18, 1
      $region12: #{tpu_custom_call.1} parent=5 // pred_fallthru
        _
      %p157 = scmp.lt.s32.totalorder %s18, 2
      // Predicated region
      $region13: #{tpu_custom_call.1} parent=5 // pred_check
        %p158 = pneg %p157
      $region14: #{tpu_custom_call.1} parent=5 // pred_check_branch
        %160 = sbr.rel (%p158) target = $region16
      $region15: #{tpu_custom_call.1} parent=5 // pred_region
        // Predicated region
        $region17: #{tpu_custom_call.1} parent=15 // pred_check
          %p161 = pneg %p52
        $region18: #{tpu_custom_call.1} parent=15 // pred_check_branch
          %163 = sbr.rel (%p161) target = $region20
        $region19: #{tpu_custom_call.1} parent=15 // pred_region
          %s164 = sand.u32 %s42, 1
          %s165 = scalar_lea.sflag [#allocation3], %s164
          %s166 = sand.u32 %s42, 1
          %s167 = smul.addr %s166, 8
          %s168 = scalar_lea.vmem [#allocation2], %s167
          %s170 = ssub.s32 128, 128
          %171 = vsyncadd %s165, %s170
          %s172 = smul.addr %s25, 4
          %s173 = sadd.s32 %s26, %s172
          %s174 = smul.addr %s173, 32
          %s175 = scalar_lea.hbm %s0, %s174
          %s176 = sshll.u32 %s168, 4
          %s177 = int_to_ptr.vmem [resolvable:$true] %s176
          %182 = dma.hbm_to_vmem [thread:$0]  %s175, 128, %s177, %s165, 32, 32, 2
        $region20: #{tpu_custom_call.1} parent=15 // pred_fallthru
          _
        // Predicated region
        $region21: #{tpu_custom_call.1} parent=15 // pred_check
          %p183 = pneg %p80
        $region22: #{tpu_custom_call.1} parent=15 // pred_check_branch
          %185 = sbr.rel (%p183) target = $region24
        $region23: #{tpu_custom_call.1} parent=15 // pred_region
          %s186 = sand.u32 %s18, 1
          %s187 = scalar_lea.sflag [#allocation6], %s186
          %s188 = sand.u32 %s70, 1
          %s189 = smul.addr %s188, 2
          %s190 = scalar_lea.vmem [#allocation5], %s189
          %s192 = ssub.s32 32, 32
          %193 = vsyncadd %s187, %s192
          %s194 = sadd.s32 %s26, %s25
          %s195 = smul.addr %s194, 32
          %s196 = scalar_lea.hbm %s1, %s195
          %s198 = sshll.u32 %s190, 4
          %s199 = int_to_ptr.vmem [resolvable:$true] %s198
          %201 = dma.hbm_to_vmem [thread:$0]  %s196, 32, %s199, %s187
        $region24: #{tpu_custom_call.1} parent=15 // pred_fallthru
          _
        // Predicated region
        $region25: #{tpu_custom_call.1} parent=15 // pred_check
          %p202 = pneg %p108
        $region26: #{tpu_custom_call.1} parent=15 // pred_check_branch
          %204 = sbr.rel (%p202) target = $region28
        $region27: #{tpu_custom_call.1} parent=15 // pred_region
          %s205 = sand.u32 %s18, 1
          %s206 = scalar_lea.sflag [#allocation6], %s205
          %s207 = sand.u32 %s98, 1
          %s208 = smul.addr %s207, 2
          %s209 = scalar_lea.vmem [#allocation7], %s208
          %s211 = ssub.s32 32, 32
          %212 = vsyncadd %s206, %s211
          %s213 = sadd.s32 %s26, %s25
          %s214 = smul.addr %s213, 32
          %s215 = scalar_lea.hbm %s2, %s214
          %s217 = sshll.u32 %s209, 4
          %s218 = int_to_ptr.vmem [resolvable:$true] %s217
          %220 = dma.hbm_to_vmem [thread:$0]  %s215, 32, %s218, %s206
        $region28: #{tpu_custom_call.1} parent=15 // pred_fallthru
          _
      $region16: #{tpu_custom_call.1} parent=5 // pred_fallthru
        _
      %p221 = scmp.le.s32.totalorder 1, %s18
      %p222 = scmp.lt.s32.totalorder %s18, 3
      %p223 = pnand %p221, %p222
      %p224 = pneg %p223
      // Predicated region
      $region29: #{tpu_custom_call.1} parent=5 // pred_check
        _
      $region30: #{tpu_custom_call.1} parent=5 // pred_check_branch
        %226 = sbr.rel (%p223) target = $region32
      $region31: #{tpu_custom_call.1} parent=5 // pred_region
        %s227 = ssub.s32 %s18, 1
        %s228 = sand.u32 %s45, 1
        %s229 = scalar_lea.sflag [#allocation3], %s228
        %s230 = sand.u32 %s45, 1
        %s231 = smul.addr %s230, 8
        %s232 = scalar_lea.vmem [#allocation2], %s231
        // Predicated region
        $region33: #{tpu_custom_call.1} parent=31 // pred_check
          %p233 = pneg %p58
        $region34: #{tpu_custom_call.1} parent=31 // pred_check_branch
          %235 = sbr.rel (%p233) target = $region36
        $region35: #{tpu_custom_call.1} parent=31 // pred_region
          %236 = dma.done %s229, 128
        $region36: #{tpu_custom_call.1} parent=31 // pred_fallthru
          _
        %s237 = sand.u32 %s23, 1
        %s238 = scalar_lea.sflag [#allocation6], %s237
        %s239 = sand.u32 %s73, 1
        %s240 = smul.addr %s239, 2
        %s241 = scalar_lea.vmem [#allocation5], %s240
        // Predicated region
        $region37: #{tpu_custom_call.1} parent=31 // pred_check
          %p242 = pneg %p86
        $region38: #{tpu_custom_call.1} parent=31 // pred_check_branch
          %244 = sbr.rel (%p242) target = $region40
        $region39: #{tpu_custom_call.1} parent=31 // pred_region
          %245 = dma.done %s238, 32
        $region40: #{tpu_custom_call.1} parent=31 // pred_fallthru
          _
        %s246 = sand.u32 %s23, 1
        %s247 = scalar_lea.sflag [#allocation6], %s246
        %s248 = sand.u32 %s101, 1
        %s249 = smul.addr %s248, 2
        %s250 = scalar_lea.vmem [#allocation7], %s249
        // Predicated region
        $region41: #{tpu_custom_call.1} parent=31 // pred_check
          %p251 = pneg %p114
        $region42: #{tpu_custom_call.1} parent=31 // pred_check_branch
          %253 = sbr.rel (%p251) target = $region44
        $region43: #{tpu_custom_call.1} parent=31 // pred_region
          %254 = dma.done %s247, 32
        $region44: #{tpu_custom_call.1} parent=31 // pred_fallthru
          _
        %s255 = sand.u32 %s45, 1
        %s256 = scalar_lea.sflag [#allocation3], %s255
        %s257 = sand.u32 %s45, 1
        %s258 = smul.addr %s257, 8
        %s259 = scalar_lea.vmem [#allocation2], %s258
        %p260 = pneg %p58
        %p261 = pneg %p55
        %s262 = sand.u32 %s23, 1
        %s263 = scalar_lea.sflag [#allocation6], %s262
        %s264 = sand.u32 %s73, 1
        %s265 = smul.addr %s264, 2
        %s266 = scalar_lea.vmem [#allocation5], %s265
        %p267 = pneg %p86
        %p268 = pneg %p83
        %s269 = sand.u32 %s23, 1
        %s270 = scalar_lea.sflag [#allocation6], %s269
        %s271 = sand.u32 %s101, 1
        %s272 = smul.addr %s271, 2
        %s273 = scalar_lea.vmem [#allocation7], %s272
        %p274 = pneg %p114
        %p275 = pneg %p111
        %p276 = pneg %p142
        %p277 = pneg %p139
        %s278 = sand.u32 %s129, 1
        %s279 = scalar_lea.sflag [#allocation4], %s278
        %s280 = sand.u32 %s129, 1
        %s281 = scalar_lea.vmem [#allocation8], %s280
        %v282 = vld [vmem:[%s241] sm:$0x3]
        %v283 = vld [vmem:[%s232] sm:$0x3]
        %s284 = scalar_lea.vmem %s232, 2 [#allocation2]
        %v285 = vld [vmem:[%s284] sm:$0x3]
        %v286 = vmax.f32 %v283, %v285
        %s287 = scalar_lea.vmem %s232, 4 [#allocation2]
        %v288 = vld [vmem:[%s287] sm:$0x3]
        %v289 = vmax.f32 %v286, %v288
        %s290 = scalar_lea.vmem %s232, 6 [#allocation2]
        %v291 = vld [vmem:[%s290] sm:$0x3]
        %v292 = vmax.f32 %v289, %v291
        %v293 = vsub.f32 %v283, %v292
        %v294 = vmul.f32 %v293, 1.442695
        %v295 = vpow.pop %v294
        %v296 = vadd.f32 %v295, 0.0
        %vm297 = vcmp.eq.s32.totalorder %v282, 0
        %v298 = vsel %vm297, %v293, 0.0
        %v299 = vsub.f32 %v285, %v292
        %v300 = vmul.f32 %v299, 1.442695
        %v301 = vpow.pop %v300
        %v302 = vadd.f32 %v296, %v301
        %vm303 = vcmp.eq.s32.totalorder %v282, 1
        %v304 = vsel %vm303, %v299, %v298
        %v305 = vsub.f32 %v288, %v292
        %v306 = vmul.f32 %v305, 1.442695
        %v307 = vpow.pop %v306
        %v308 = vadd.f32 %v302, %v307
        %vm309 = vcmp.eq.s32.totalorder %v282, 2
        %v310 = vsel %vm309, %v305, %v304
        %v311 = vsub.f32 %v291, %v292
        %v312 = vmul.f32 %v311, 1.442695
        %v313 = vpow.pop %v312
        %v314 = vadd.f32 %v308, %v313
        %vm315 = vcmp.eq.s32.totalorder %v282, 3
        %v316 = vsel %vm315, %v311, %v310
        %v317 = vlog2.pop %v314
        %v318 = vmul.f32 %v317, 0.6931472
        %v319 = vsub.f32 %v318, %v316
        %v320 = vld [vmem:[%s250] sm:$0x3]
        %vm321 = vcmp.gt.f32.partialorder %v320, 0.0
        %v322 = vsel %vm321, 5.0, 1.0
        %v323 = vmul.f32 %v322, %v319
        %v324 = vadd.f32 %v323, 0.0
        %vm325 = vcmask 1041408
        %v326 = vsel %vm325, %v324, 0.0
        %v327 = vrot.slane %v326, 4
        %v328 = vadd.f32 %v326, %v327
        %v329 = vrot.slane %v328, 2
        %v330 = vadd.f32 %v328, %v329
        %v331 = vrot.slane %v330, 1
        %v332 = vadd.f32 %v330, %v331
        %333 = vst [vmem:[%s281] sm:$0x1] %v332
        %s334 = sand.u32 %s129, 1
        %s335 = scalar_lea.sflag [#allocation4], %s334
        %s336 = sand.u32 %s129, 1
        %s337 = scalar_lea.vmem [#allocation8], %s336
        // Predicated region
        $region45: #{tpu_custom_call.1} parent=31 // pred_check
          %p338 = pneg %p139
        $region46: #{tpu_custom_call.1} parent=31 // pred_check_branch
          %340 = sbr.rel (%p338) target = $region48
        $region47: #{tpu_custom_call.1} parent=31 // pred_region
          %s342 = ssub.s32 16, 16
          %343 = vsyncadd %s335, %s342
          %s344 = sadd.s32 %s28, %s27
          %s345 = smul.addr %s344, 16
          %s346 = scalar_lea.hbm %s3, %s345
          %s348 = sshll.u32 %s337, 4
          %s349 = int_to_ptr.vmem [resolvable:$true] %s348
          %351 = dma.vmem_to_hbm [thread:$0]  %s349, 16, %s346, %s335
        $region48: #{tpu_custom_call.1} parent=31 // pred_fallthru
          _
      $region32: #{tpu_custom_call.1} parent=5 // pred_fallthru
        _
      %p352 = scmp.le.s32.totalorder 2, %s18
      // Predicated region
      $region49: #{tpu_custom_call.1} parent=5 // pred_check
        %p353 = pneg %p352
      $region50: #{tpu_custom_call.1} parent=5 // pred_check_branch
        %355 = sbr.rel (%p353) target = $region52
      $region51: #{tpu_custom_call.1} parent=5 // pred_region
        %s356 = ssub.s32 %s18, 2
        // Predicated region
        $region53: #{tpu_custom_call.1} parent=51 // pred_check
          %p357 = pneg %p145
        $region54: #{tpu_custom_call.1} parent=51 // pred_check_branch
          %359 = sbr.rel (%p357) target = $region56
        $region55: #{tpu_custom_call.1} parent=51 // pred_region
          %s360 = sand.u32 %s130, 1
          %s361 = scalar_lea.sflag [#allocation4], %s360
          %s362 = sand.u32 %s130, 1
          %s363 = scalar_lea.vmem [#allocation8], %s362
          %364 = dma.done %s361, 16
        $region56: #{tpu_custom_call.1} parent=51 // pred_fallthru
          _
      $region52: #{tpu_custom_call.1} parent=5 // pred_fallthru
        _
    $region6: #{tpu_custom_call.1} parent=1 // loop_footer
      %s22 = sadd.s32 1, %s18
    $region7: #{tpu_custom_call.1} parent=1 // loop_footer_branch
      %17 = sbr.rel target = $region3
    $region8: #{tpu_custom_call.1} parent=1 // loop_exit
      _
    %365 = vsyncpa [#allocation3], 1
    %s366 = scalar_lea.sflag [#allocation3], 1
    %367 = vsyncpa %s366, 1
    %368 = vsyncpa [#allocation6], 1
    %s369 = scalar_lea.sflag [#allocation6], 1
    %370 = vsyncpa %s369, 1
    %371 = vsyncpa [#allocation4], 1
    %s372 = scalar_lea.sflag [#allocation4], 1
    %373 = vsyncpa %s372, 1

</llo_original>
